<compile_context>
chip_gen: v7x
topology: tpu7x:2x2x1
jax: 0.10.0
libtpu: 0.0.40
codegen_flags: <defaults>
</compile_context>

<pallas_src>
import jax
import jax.numpy as jnp
from jax.experimental import pallas as pl
from jax.experimental.pallas import tpu as pltpu


EPS = 1e-5
LANE = 128
SUBLANE = 8

# The b1/b2 cancellation is only exact for *training-mode* BatchNorm (PyTorch
# default forward on a module that has not been .eval()'d).  Guard in code.
BN_TRAINING_MODE = True


def _round_up(n, m):
    return ((n + m - 1) // m) * m


def _make_kernel(matmul_dtype):
    """Fused forward kernel.  matmul_dtype is the MXU operand dtype (f32 for
    exact module semantics, bf16 for the fast v6e/v7x MXU path); accumulation
    and all BatchNorm statistics stay in f32 either way."""

    def kernel(x_ref, w1_ref, w2_ref, w3_ref, pp_ref, o_ref):
        x = x_ref[...]
        inv_b = 1.0 / x.shape[0]

        h1p = w1_ref.shape[1]
        h2p = w2_ref.shape[1]
        outp = o_ref.shape[1]

        # Packed small params: one (8, wmax) VMEM tile, read once, sliced as a
        # value.  rows = [g1, be1, g2, be2, b3, 0, 0, 0] (zero-padded columns).
        pp = pp_ref[...]

        def bn_relu(h, g, be):
            # Single-pass moments (training-mode BN, biased variance), f32.
            s1 = jnp.sum(h, axis=0, keepdims=True)
            s2 = jnp.sum(h * h, axis=0, keepdims=True)
            mean = s1 * inv_b
            var = jnp.maximum(s2 * inv_b - mean * mean, 0.0)
            scale = g * jax.lax.rsqrt(var + EPS)        # EUP rsqrt, fused w/ gamma
            shift = be - mean * scale
            return jnp.maximum(h * scale + shift, 0.0)  # one mul + one add + relu

        # layer1 (+BN1+ReLU) -- linear bias omitted: cancels under BN mean-sub
        h = jnp.dot(x, w1_ref[...], preferred_element_type=jnp.float32)
        h = bn_relu(h, pp[0:1, :h1p], pp[1:2, :h1p])

        # layer2 (+BN2+ReLU) -- linear bias omitted: cancels under BN mean-sub
        h = jnp.dot(h.astype(matmul_dtype), w2_ref[...],
                    preferred_element_type=jnp.float32)
        h = bn_relu(h, pp[2:3, :h2p], pp[3:4, :h2p])

        # layer3 (bias kept; no BN after it)
        out = jnp.dot(h.astype(matmul_dtype), w3_ref[...],
                      preferred_element_type=jnp.float32) + pp[4:5, :outp]
        o_ref[...] = out.astype(o_ref.dtype)

    return kernel


def _vmem_capacity_bytes():
    """Per-TensorCore VMEM capacity; conservative fallback if the query fails."""
    try:
        cap = getattr(pltpu.get_tpu_info(), "vmem_capacity_bytes", None)
        if cap:
            return int(cap)
    except Exception:
        pass
    return 64 * 1024 * 1024  # v7x per-TC size (smallest of v5e/v6e/v7x)


def ann_batch2_forward(x, params, *, matmul_dtype=jnp.float32):
    """x: (B, input_size) float32; params: dict from init_params().

    matmul_dtype=jnp.bfloat16 selects the native-MXU operand path (v6e/v7x);
    accumulation and BN statistics remain f32."""
    if not BN_TRAINING_MODE:
        raise NotImplementedError(
            "b1/b2 are omitted because training-mode BatchNorm cancels them "
            "exactly; eval-mode (running-stat) BN would need them re-added.")

    B, in_size = x.shape
    h1 = params["w1"].shape[1]
    h2 = params["w2"].shape[1]
    out_size = params["w3"].shape[1]

    # Pad feature dims to lane width so matmul operands and the output store
    # are lane-dense (no masked vst.msk partial stores).
    # TODO(synk): use 256-wide N tiles on v6e/v7x if hidden dims ever get tiled.
    h1p = _round_up(h1, LANE)
    h2p = _round_up(h2, LANE)
    outp = _round_up(out_size, LANE)
    wmax = max(h1p, h2p, outp)

    def pad2(a, rows, cols):
        return jnp.pad(a, ((0, rows - a.shape[0]), (0, cols - a.shape[1])))

    w1 = pad2(params["w1"], in_size, h1p).astype(matmul_dtype)
    w2 = pad2(params["w2"], h1p, h2p).astype(matmul_dtype)
    w3 = pad2(params["w3"], h2p, outp).astype(matmul_dtype)
    xk = x.astype(matmul_dtype)

    def row(a, width):
        a = a.reshape(1, -1)
        return jnp.pad(a, ((0, 0), (0, width - a.shape[1])))

    # Pack the five small (1, N) f32 params into one (8, wmax) tile -> one DMA.
    pp = jnp.concatenate(
        [row(params["g1"], wmax), row(params["be1"], wmax),
         row(params["g2"], wmax), row(params["be2"], wmax),
         row(params["b3"], wmax),
         jnp.zeros((SUBLANE - 5, wmax), jnp.float32)], axis=0)

    args = (xk, w1, w2, w3, pp)

    # VMEM budgeting: whole batch resident (single-pass BN couples the batch).
    # Gate on the actual per-TC capacity instead of a hard-coded constant.
    required = (
        sum(int(a.size) * a.dtype.itemsize for a in args)   # kernel operands
        + B * outp * 4                                       # output block
        + B * (h1p + h2p) * 4                                # f32 activations
    )
    cap = _vmem_capacity_bytes()
    headroom = 8 * 1024 * 1024
    if 2 * required > cap - headroom:
        # TODO(synk): batch-tiled two-pass BN pipeline (accumulate per-feature
        # sum/sumsq across batch tiles with weights resident, then normalize
        # per tile) for batches whose activations exceed VMEM; that grid is
        # also where a "parallel" batch-tile axis would use v7x's second TC.
        raise NotImplementedError(
            f"batch too large for single-pass whole-batch BN "
            f"({required} bytes needed, {cap} bytes VMEM per core)")
    vmem_limit = int(min(cap - headroom, max(2 * required, 32 * 1024 * 1024)))

    vmem = pltpu.MemorySpace.VMEM
    out_padded = pl.pallas_call(
        _make_kernel(matmul_dtype),
        out_shape=jax.ShapeDtypeStruct((B, outp), jnp.float32),
        in_specs=[pl.BlockSpec(memory_space=vmem) for _ in args],
        out_specs=pl.BlockSpec(memory_space=vmem),
        compiler_params=pltpu.CompilerParams(vmem_limit_bytes=vmem_limit),
    )(*args)

    # Padded gamma/beta/bias columns are zero, so padded lanes are exactly 0.
    return out_padded[:, :out_size]


def init_params(key, input_size, hidden1, hidden2, output_size):
    """Deterministic synthetic parameters (PyTorch-like uniform init ranges)."""
    ks = jax.random.split(key, 6)

    def linear(kw, kb, fan_in, fan_out):
        bound = 1.0 / jnp.sqrt(fan_in)
        # stored as (in, out) so the kernel computes x @ W
        w = jax.random.uniform(kw, (fan_in, fan_out), jnp.float32, -bound, bound)
        b = jax.random.uniform(kb, (1, fan_out), jnp.float32, -bound, bound)
        return w, b

    w1, b1 = linear(ks[0], ks[1], input_size, hidden1)
    w2, b2 = linear(ks[2], ks[3], hidden1, hidden2)
    w3, b3 = linear(ks[4], ks[5], hidden2, output_size)

    return {
        "w1": w1, "b1": b1,
        "g1": jnp.ones((1, hidden1), jnp.float32), "be1": jnp.zeros((1, hidden1), jnp.float32),
        "w2": w2, "b2": b2,
        "g2": jnp.ones((1, hidden2), jnp.float32), "be2": jnp.zeros((1, hidden2), jnp.float32),
        "w3": w3, "b3": b3,
    }


def reference_forward(x, p, matmul_dtype=jnp.float32):
    """Plain-JAX reference identical to the PyTorch forward (training-mode BN).
    f32 variant: HIGHEST matmul precision (true f32 semantics).  bf16 variant:
    rounds matmul operands exactly like the bf16 kernel path (f32 accumulation).
    The reference DOES apply b1/b2 — the kernel omits them because the
    per-batch BN mean subtraction cancels them exactly."""
    if jnp.dtype(matmul_dtype) == jnp.float32:
        def dot(a, w):
            return jnp.dot(a, w, precision=jax.lax.Precision.HIGHEST,
                           preferred_element_type=jnp.float32)
    else:
        def dot(a, w):
            return jnp.dot(a.astype(matmul_dtype), w.astype(matmul_dtype),
                           preferred_element_type=jnp.float32)

    h = dot(x, p["w1"]) + p["b1"]
    m, v = jnp.mean(h, 0, keepdims=True), jnp.var(h, 0, keepdims=True)
    h = jnp.maximum((h - m) / jnp.sqrt(v + EPS) * p["g1"] + p["be1"], 0.0)
    h = dot(h, p["w2"]) + p["b2"]
    m, v = jnp.mean(h, 0, keepdims=True), jnp.var(h, 0, keepdims=True)
    h = jnp.maximum((h - m) / jnp.sqrt(v + EPS) * p["g2"] + p["be2"], 0.0)
    return dot(h, p["w3"]) + p["b3"]


if __name__ == "__main__":
    key = jax.random.PRNGKey(0)
    k_x, k_p = jax.random.split(key)

    # Small demo shapes.  B=64 (vs. 8 previously) amortizes fixed per-call /
    # DMA-descriptor overhead and feeds more rows per MXU push; the wrapper
    # accepts any B whose activations fit in VMEM.
    batch, input_size, hidden1, hidden2, output_size = 64, 32, 64, 32, 8
    x = jax.random.normal(k_x, (batch, input_size), jnp.float32)
    params = init_params(k_p, input_size, hidden1, hidden2, output_size)

    # f32-operand path (module's native precision).
    out_f32 = jax.block_until_ready(ann_batch2_forward(x, params))
    ref_f32 = reference_forward(x, params)
    assert out_f32.shape == (batch, output_size)
    # Tolerance covers TPU matmul pass-count differences (MXU f32 decomposition
    # vs XLA's default/HIGHEST f32 dot) on top of the single-pass BN variance.
    assert jnp.allclose(out_f32, ref_f32, atol=1e-2, rtol=1e-2), "f32 mismatch"

    # bf16-operand fast path (native MXU dtype on v6e/v7x; halves weight DMA),
    # checked against a reference that rounds matmul operands identically.
    out_bf16 = jax.block_until_ready(
        ann_batch2_forward(x, params, matmul_dtype=jnp.bfloat16))
    ref_bf16 = reference_forward(x, params, matmul_dtype=jnp.bfloat16)
    assert out_bf16.shape == (batch, output_size)
    assert jnp.allclose(out_bf16, ref_bf16, atol=1e-2, rtol=1e-2), "bf16 mismatch"

    print("KERNEL_OK")
</pallas_src>

<mosaic_0001>
module attributes {stable_mosaic.version = 11 : i64} {
  func.func @kernel(%arg0: memref<64x32xf32, #tpu.memory_space<vmem>>, %arg1: memref<32x128xf32, #tpu.memory_space<vmem>>, %arg2: memref<128x128xf32, #tpu.memory_space<vmem>>, %arg3: memref<128x128xf32, #tpu.memory_space<vmem>>, %arg4: memref<8x128xf32, #tpu.memory_space<vmem>>, %arg5: memref<64x128xf32, #tpu.memory_space<vmem>>) attributes {dimension_semantics = [], scalar_prefetch = 0 : i64, scratch_operands = 0 : i64, tpu.core_type = #tpu.core_type<tc>} {
    %c0 = arith.constant 0 : index
    %c0_0 = arith.constant 0 : index
    %0 = vector.load %arg0[%c0, %c0_0] : memref<64x32xf32, #tpu.memory_space<vmem>>, vector<64x32xf32>
    %c0_1 = arith.constant 0 : index
    %c0_2 = arith.constant 0 : index
    %1 = vector.load %arg4[%c0_1, %c0_2] : memref<8x128xf32, #tpu.memory_space<vmem>>, vector<8x128xf32>
    %c0_3 = arith.constant 0 : index
    %c0_4 = arith.constant 0 : index
    %2 = vector.load %arg1[%c0_3, %c0_4] : memref<32x128xf32, #tpu.memory_space<vmem>>, vector<32x128xf32>
    %cst = arith.constant dense<0.000000e+00> : vector<64x128xf32>
    %3 = tpu.matmul %0, %2, %cst {dimension_numbers = #tpu.dot_dimension_numbers<[1], [0], [0], [1], [0, 0, 1, 1], [], []>} : vector<64x32xf32>, vector<32x128xf32>, vector<64x128xf32> -> vector<64x128xf32>
    %4 = vector.extract_strided_slice %1 {offsets = [0, 0], sizes = [1, 128], strides = [1, 1]} : vector<8x128xf32> to vector<1x128xf32>
    %5 = vector.extract_strided_slice %1 {offsets = [1, 0], sizes = [1, 128], strides = [1, 1]} : vector<8x128xf32> to vector<1x128xf32>
    %cst_5 = arith.constant dense<0.000000e+00> : vector<128xf32>
    %6 = vector.multi_reduction <add>, %3, %cst_5 [0] : vector<64x128xf32> to vector<128xf32>
    %7 = vector.shape_cast %6 : vector<128xf32> to vector<1x128xf32>
    %8 = arith.mulf %3, %3 : vector<64x128xf32>
    %cst_6 = arith.constant dense<0.000000e+00> : vector<128xf32>
    %9 = vector.multi_reduction <add>, %8, %cst_6 [0] : vector<64x128xf32> to vector<128xf32>
    %10 = vector.shape_cast %9 : vector<128xf32> to vector<1x128xf32>
    %cst_7 = arith.constant 1.562500e-02 : f32
    %11 = vector.broadcast %cst_7 : f32 to vector<1x128xf32>
    %12 = arith.mulf %7, %11 : vector<1x128xf32>
    %cst_8 = arith.constant 1.562500e-02 : f32
    %13 = vector.broadcast %cst_8 : f32 to vector<1x128xf32>
    %14 = arith.mulf %10, %13 : vector<1x128xf32>
    %15 = arith.mulf %12, %12 : vector<1x128xf32>
    %16 = arith.subf %14, %15 : vector<1x128xf32>
    %cst_9 = arith.constant 0.000000e+00 : f32
    %17 = vector.broadcast %cst_9 : f32 to vector<1x128xf32>
    %18 = arith.maximumf %16, %17 : vector<1x128xf32>
    %cst_10 = arith.constant 9.99999974E-6 : f32
    %19 = vector.broadcast %cst_10 : f32 to vector<1x128xf32>
    %20 = arith.addf %18, %19 : vector<1x128xf32>
    %21 = math.rsqrt %20 : vector<1x128xf32>
    %22 = arith.mulf %4, %21 : vector<1x128xf32>
    %23 = arith.mulf %12, %22 : vector<1x128xf32>
    %24 = arith.subf %5, %23 : vector<1x128xf32>
    %25 = vector.broadcast %22 : vector<1x128xf32> to vector<64x128xf32>
    %26 = arith.mulf %3, %25 : vector<64x128xf32>
    %27 = vector.broadcast %24 : vector<1x128xf32> to vector<64x128xf32>
    %28 = arith.addf %26, %27 : vector<64x128xf32>
    %cst_11 = arith.constant 0.000000e+00 : f32
    %29 = vector.broadcast %cst_11 : f32 to vector<64x128xf32>
    %30 = arith.maximumf %28, %29 : vector<64x128xf32>
    %c0_12 = arith.constant 0 : index
    %c0_13 = arith.constant 0 : index
    %31 = vector.load %arg2[%c0_12, %c0_13] : memref<128x128xf32, #tpu.memory_space<vmem>>, vector<128x128xf32>
    %cst_14 = arith.constant dense<0.000000e+00> : vector<64x128xf32>
    %32 = tpu.matmul %30, %31, %cst_14 {dimension_numbers = #tpu.dot_dimension_numbers<[1], [0], [0], [1], [0, 0, 1, 1], [], []>} : vector<64x128xf32>, vector<128x128xf32>, vector<64x128xf32> -> vector<64x128xf32>
    %33 = vector.extract_strided_slice %1 {offsets = [2, 0], sizes = [1, 128], strides = [1, 1]} : vector<8x128xf32> to vector<1x128xf32>
    %34 = vector.extract_strided_slice %1 {offsets = [3, 0], sizes = [1, 128], strides = [1, 1]} : vector<8x128xf32> to vector<1x128xf32>
    %cst_15 = arith.constant dense<0.000000e+00> : vector<128xf32>
    %35 = vector.multi_reduction <add>, %32, %cst_15 [0] : vector<64x128xf32> to vector<128xf32>
    %36 = vector.shape_cast %35 : vector<128xf32> to vector<1x128xf32>
    %37 = arith.mulf %32, %32 : vector<64x128xf32>
    %cst_16 = arith.constant dense<0.000000e+00> : vector<128xf32>
    %38 = vector.multi_reduction <add>, %37, %cst_16 [0] : vector<64x128xf32> to vector<128xf32>
    %39 = vector.shape_cast %38 : vector<128xf32> to vector<1x128xf32>
    %cst_17 = arith.constant 1.562500e-02 : f32
    %40 = vector.broadcast %cst_17 : f32 to vector<1x128xf32>
    %41 = arith.mulf %36, %40 : vector<1x128xf32>
    %cst_18 = arith.constant 1.562500e-02 : f32
    %42 = vector.broadcast %cst_18 : f32 to vector<1x128xf32>
    %43 = arith.mulf %39, %42 : vector<1x128xf32>
    %44 = arith.mulf %41, %41 : vector<1x128xf32>
    %45 = arith.subf %43, %44 : vector<1x128xf32>
    %cst_19 = arith.constant 0.000000e+00 : f32
    %46 = vector.broadcast %cst_19 : f32 to vector<1x128xf32>
    %47 = arith.maximumf %45, %46 : vector<1x128xf32>
    %cst_20 = arith.constant 9.99999974E-6 : f32
    %48 = vector.broadcast %cst_20 : f32 to vector<1x128xf32>
    %49 = arith.addf %47, %48 : vector<1x128xf32>
    %50 = math.rsqrt %49 : vector<1x128xf32>
    %51 = arith.mulf %33, %50 : vector<1x128xf32>
    %52 = arith.mulf %41, %51 : vector<1x128xf32>
    %53 = arith.subf %34, %52 : vector<1x128xf32>
    %54 = vector.broadcast %51 : vector<1x128xf32> to vector<64x128xf32>
    %55 = arith.mulf %32, %54 : vector<64x128xf32>
    %56 = vector.broadcast %53 : vector<1x128xf32> to vector<64x128xf32>
    %57 = arith.addf %55, %56 : vector<64x128xf32>
    %cst_21 = arith.constant 0.000000e+00 : f32
    %58 = vector.broadcast %cst_21 : f32 to vector<64x128xf32>
    %59 = arith.maximumf %57, %58 : vector<64x128xf32>
    %c0_22 = arith.constant 0 : index
    %c0_23 = arith.constant 0 : index
    %60 = vector.load %arg3[%c0_22, %c0_23] : memref<128x128xf32, #tpu.memory_space<vmem>>, vector<128x128xf32>
    %cst_24 = arith.constant dense<0.000000e+00> : vector<64x128xf32>
    %61 = tpu.matmul %59, %60, %cst_24 {dimension_numbers = #tpu.dot_dimension_numbers<[1], [0], [0], [1], [0, 0, 1, 1], [], []>} : vector<64x128xf32>, vector<128x128xf32>, vector<64x128xf32> -> vector<64x128xf32>
    %62 = vector.extract_strided_slice %1 {offsets = [4, 0], sizes = [1, 128], strides = [1, 1]} : vector<8x128xf32> to vector<1x128xf32>
    %63 = vector.broadcast %62 : vector<1x128xf32> to vector<64x128xf32>
    %64 = arith.addf %61, %63 : vector<64x128xf32>
    %c0_25 = arith.constant 0 : index
    %c0_26 = arith.constant 0 : index
    %65 = vector.load %arg5[%c0_25, %c0_26] : memref<64x128xf32, #tpu.memory_space<vmem>>, vector<64x128xf32>
    tpu.vector_store %arg5[%c0_25, %c0_26], %64 {strides = array<i32>} : memref<64x128xf32, #tpu.memory_space<vmem>>, vector<64x128xf32>,
    return
  }
}

</mosaic_0001>

<llo_original>
// kernel: tpu_custom_call.1
$region0: #{tpu_custom_call.1}
  #allocation0 [shape = 'u32[]', space=smem, size = 0x4, offset = 0x4, fixed_abs, tag = 'smem constant byte address 0x4 - core index']
  #allocation1 [shape = 'u32[144,128]{1,0:T(1,128)}', space=vmem, size = 0x12000, scoped, tag = 'internal scratch']
  %s0 = inlined_call_operand.vmem [shape: f32[64,32], index: 0, kind: input, shape index: {}]
  %s1 = inlined_call_operand.vmem [shape: f32[32,128], index: 1, kind: input, shape index: {}]
  %s2 = inlined_call_operand.hbm [shape: f32[128,128], index: 2, kind: input, shape index: {}]
  %s3 = inlined_call_operand.hbm [shape: f32[128,128], index: 3, kind: input, shape index: {}]
  %s4 = inlined_call_operand.vmem [shape: f32[8,128], index: 4, kind: input, shape index: {}]
  %s5 = inlined_call_operand.hbm [shape: f32[64,128], index: 5, kind: output, shape index: {}]
  %s6 = sld [smem:[#allocation0]]
  $region38: #{tpu_custom_call.1} parent=0
    _
  %s8 = ssub.s32 1, %s6
  %s9 = scalar_select 0, %s8, %s6
  $region1: #{tpu_custom_call.1} parent=0
    #allocation2 [shape = 'u8[65536]{0}', space=vmem, size = 0x10000, scoped, tag = 'input window, operand 2, single buffered']
    #allocation3 [shape = 's32[1]{0}', space=sflag, size = 0x4, scoped, tag = 'scoped memory for tpu_custom_call.1']
    #allocation4 [shape = 's32[1]{0}', space=sflag, size = 0x4, scoped, tag = 'scoped memory for tpu_custom_call.1']
    #allocation5 [shape = 'u8[65536]{0}', space=vmem, size = 0x10000, scoped, tag = 'input window, operand 3, single buffered']
    #allocation6 [shape = 's32[1]{0}', space=sflag, size = 0x4, scoped, tag = 'scoped memory for tpu_custom_call.1']
    #allocation7 [shape = 'u8[32768]{0}', space=vmem, size = 0x8000, scoped, tag = 'output window, operand 0, single buffered']
    %10 = vsyncpa [#allocation3], 0
    %11 = vsyncpa [#allocation6], 0
    %12 = vsyncpa [#allocation4], 0
    // Predicated region
    $region2: #{tpu_custom_call.1} parent=1 // pred_check
      _
    $region3: #{tpu_custom_call.1} parent=1 // pred_check_branch
      %14 = sbr.rel (0) target = $region5
    $region4: #{tpu_custom_call.1} parent=1 // pred_region
      _
    $region5: #{tpu_custom_call.1} parent=1 // pred_fallthru
      _
    // Predicated region
    $region6: #{tpu_custom_call.1} parent=1 // pred_check
      _
    $region7: #{tpu_custom_call.1} parent=1 // pred_check_branch
      %16 = sbr.rel (0) target = $region9
    $region8: #{tpu_custom_call.1} parent=1 // pred_region
      _
    $region9: #{tpu_custom_call.1} parent=1 // pred_fallthru
      _
    // Predicated region
    $region10: #{tpu_custom_call.1} parent=1 // pred_check
      _
    $region11: #{tpu_custom_call.1} parent=1 // pred_check_branch
      %18 = sbr.rel (0) target = $region13
    $region12: #{tpu_custom_call.1} parent=1 // pred_region
      %s20 = ssub.s32 2048, 2048
      %21 = vsyncadd [#allocation3], %s20
      %s22 = sshll.u32 [#allocation2], 4
      %s23 = int_to_ptr.vmem [resolvable:$true] %s22
      %28 = dma.hbm_to_vmem [thread:$0]  %s2, 2048, %s23, [#allocation3], 128, 128, 8
    $region13: #{tpu_custom_call.1} parent=1 // pred_fallthru
      _
    // Predicated region
    $region14: #{tpu_custom_call.1} parent=1 // pred_check
      _
    $region15: #{tpu_custom_call.1} parent=1 // pred_check_branch
      %30 = sbr.rel (0) target = $region17
    $region16: #{tpu_custom_call.1} parent=1 // pred_region
      %s32 = ssub.s32 2048, 2048
      %33 = vsyncadd [#allocation6], %s32
      %s34 = sshll.u32 [#allocation5], 4
      %s35 = int_to_ptr.vmem [resolvable:$true] %s34
      %40 = dma.hbm_to_vmem [thread:$0]  %s3, 2048, %s35, [#allocation6], 128, 128, 8
    $region17: #{tpu_custom_call.1} parent=1 // pred_fallthru
      _
    // Predicated region
    $region18: #{tpu_custom_call.1} parent=1 // pred_check
      _
    $region19: #{tpu_custom_call.1} parent=1 // pred_check_branch
      %42 = sbr.rel (0) target = $region21
    $region20: #{tpu_custom_call.1} parent=1 // pred_region
      _
    $region21: #{tpu_custom_call.1} parent=1 // pred_fallthru
      _
    // Predicated region
    $region22: #{tpu_custom_call.1} parent=1 // pred_check
      _
    $region23: #{tpu_custom_call.1} parent=1 // pred_check_branch
      %44 = sbr.rel (0) target = $region25
    $region24: #{tpu_custom_call.1} parent=1 // pred_region
      %45 = dma.done [#allocation3], 2048
    $region25: #{tpu_custom_call.1} parent=1 // pred_fallthru
      _
    // Predicated region
    $region26: #{tpu_custom_call.1} parent=1 // pred_check
      _
    $region27: #{tpu_custom_call.1} parent=1 // pred_check_branch
      %47 = sbr.rel (0) target = $region29
    $region28: #{tpu_custom_call.1} parent=1 // pred_region
      %48 = dma.done [#allocation6], 2048
    $region29: #{tpu_custom_call.1} parent=1 // pred_fallthru
      _
    %v49 = vld [vmem:[%s0] sm:$0xff]
    %v50 = vld [vmem:[%s0 + $0x8] sm:$0xff]
    %v51 = vld [vmem:[%s0 + $0x10] sm:$0xff]
    %v52 = vld [vmem:[%s0 + $0x18] sm:$0xff]
    %v53 = vld [vmem:[%s0 + $0x20] sm:$0xff]
    %v54 = vld [vmem:[%s0 + $0x28] sm:$0xff]
    %v55 = vld [vmem:[%s0 + $0x30] sm:$0xff]
    %v56 = vld [vmem:[%s0 + $0x38] sm:$0xff]
    %v57 = vld [vmem:[%s4] sm:$0xff]
    %v58 = vld [vmem:[%s1] sm:$0xff]
    %v59 = vld [vmem:[%s1 + $0x8] sm:$0xff]
    %v60 = vld [vmem:[%s1 + $0x10] sm:$0xff]
    %v61 = vld [vmem:[%s1 + $0x18] sm:$0xff]
    %vm62 = vcmask 261120
    %v64 = vsel %vm62, %v49, 0
    %v67 = vsel %vm62, %v50, 0
    %v70 = vsel %vm62, %v51, 0
    %v73 = vsel %vm62, %v52, 0
    %v76 = vsel %vm62, %v53, 0
    %v79 = vsel %vm62, %v54, 0
    %v82 = vsel %vm62, %v55, 0
    %v85 = vsel %vm62, %v56, 0
    %87 = vmatprep.subr.mxu0 0.0
    %88 = vmatpush1.msra.mxu0 %v58
    %89 = vmatprep.subr.mxu0 0.0
    %90 = vmatpush1.msra.mxu0 %v59
    %91 = vmatprep.subr.mxu0 0.0
    %92 = vmatpush1.msra.mxu0 %v60
    %93 = vmatprep.subr.mxu0 0.0
    %94 = vmatpush1.msra.mxu0 %v61
    %95 = vmatprep.subr.mxu0 0.0
    %96 = vmatpush1.msra.mxu0 0.0
    %97 = vmatprep.subr.mxu0 0.0
    %98 = vmatpush1.msra.mxu0 0.0
    %99 = vmatprep.subr.mxu0 0.0
    %100 = vmatpush1.msra.mxu0 0.0
    %101 = vmatprep.subr.mxu0 0.0
    %102 = vmatpush1.msra.mxu0 0.0
    %103 = vmatprep.subr.mxu0 0.0
    %104 = vmatpush1.msra.mxu0 0.0
    %105 = vmatprep.subr.mxu0 0.0
    %106 = vmatpush1.msra.mxu0 0.0
    %107 = vmatprep.subr.mxu0 0.0
    %108 = vmatpush1.msra.mxu0 0.0
    %109 = vmatprep.subr.mxu0 0.0
    %110 = vmatpush1.msra.mxu0 0.0
    %111 = vmatprep.subr.mxu0 0.0
    %112 = vmatpush1.msra.mxu0 0.0
    %113 = vmatprep.subr.mxu0 0.0
    %114 = vmatpush1.msra.mxu0 0.0
    %115 = vmatprep.subr.mxu0 0.0
    %116 = vmatpush1.msra.mxu0 0.0
    %117 = vmatprep.subr.mxu0 0.0
    %118 = vmatpush1.msra.mxu0 0.0
    %119 = vmatprep.subr.mxu0 0.0
    %120 = vmatpush1.msra.mxu0 0.0
    %121 = vmatprep.subr.mxu0 0.0
    %122 = vmatpush1.msra.mxu0 0.0
    %123 = vmatprep.subr.mxu0 0.0
    %124 = vmatpush1.msra.mxu0 0.0
    %125 = vmatprep.subr.mxu0 0.0
    %126 = vmatpush1.msra.mxu0 0.0
    %127 = vmatprep.subr.mxu0 0.0
    %128 = vmatpush1.msra.mxu0 0.0
    %129 = vmatprep.subr.mxu0 0.0
    %130 = vmatpush1.msra.mxu0 0.0
    %131 = vmatprep.subr.mxu0 0.0
    %132 = vmatpush1.msra.mxu0 0.0
    %133 = vmatprep.subr.mxu0 0.0
    %134 = vmatpush1.msra.mxu0 0.0
    %135 = vmatprep.subr.mxu0 0.0
    %136 = vmatpush1.msra.mxu0 0.0
    %137 = vmatprep.subr.mxu0 0.0
    %138 = vmatpush1.msra.mxu0 0.0
    %139 = vmatprep.subr.mxu0 0.0
    %140 = vmatpush1.msra.mxu0 0.0
    %141 = vmatprep.subr.mxu0 0.0
    %142 = vmatpush1.msra.mxu0 0.0
    %143 = vmatprep.subr.mxu0 0.0
    %144 = vmatpush1.msra.mxu0 0.0
    %145 = vmatprep.subr.mxu0 0.0
    %146 = vmatpush1.msra.mxu0 0.0
    %147 = vmatprep.subr.mxu0 0.0
    %148 = vmatpush1.msra.mxu0 0.0
    %149 = vmatprep.subr.mxu0 0.0
    %150 = vmatpush1.msra.mxu0 0.0
    %151 = vmatprep.mubr.f32.mxu0 0.0
    %152 = vmatmul.mubr.f32.gmra.mrb[0].mxu0 %v64
    %v153 = vpop.f32.mrb[0].mxu0
    %v154 = vadd.f32 0.0, %v153
    %v155 = vpop.f32.mrb[0].mxu0
    %156 = vmatprep.mubr.f32.mxu0 0.0
    %157 = vmatmul.mubr.f32.gmra.mrb[0].mxu0 %v67
    %v158 = vpop.f32.mrb[0].mxu0
    %v159 = vadd.f32 0.0, %v158
    %v160 = vpop.f32.mrb[0].mxu0
    %161 = vmatprep.mubr.f32.mxu0 0.0
    %162 = vmatmul.mubr.f32.gmra.mrb[0].mxu0 %v70
    %v163 = vpop.f32.mrb[0].mxu0
    %v164 = vadd.f32 0.0, %v163
    %v165 = vpop.f32.mrb[0].mxu0
    %166 = vmatprep.mubr.f32.mxu0 0.0
    %167 = vmatmul.mubr.f32.gmra.mrb[0].mxu0 %v73
    %v168 = vpop.f32.mrb[0].mxu0
    %v169 = vadd.f32 0.0, %v168
    %v170 = vpop.f32.mrb[0].mxu0
    %171 = vmatprep.mubr.f32.mxu0 0.0
    %172 = vmatmul.mubr.f32.gmra.mrb[0].mxu0 %v76
    %v173 = vpop.f32.mrb[0].mxu0
    %v174 = vadd.f32 0.0, %v173
    %v175 = vpop.f32.mrb[0].mxu0
    %176 = vmatprep.mubr.f32.mxu0 0.0
    %177 = vmatmul.mubr.f32.gmra.mrb[0].mxu0 %v79
    %v178 = vpop.f32.mrb[0].mxu0
    %v179 = vadd.f32 0.0, %v178
    %v180 = vpop.f32.mrb[0].mxu0
    %181 = vmatprep.mubr.f32.mxu0 0.0
    %182 = vmatmul.mubr.f32.gmra.mrb[0].mxu0 %v82
    %v183 = vpop.f32.mrb[0].mxu0
    %v184 = vadd.f32 0.0, %v183
    %v185 = vpop.f32.mrb[0].mxu0
    %186 = vmatprep.mubr.f32.mxu0 0.0
    %187 = vmatmul.mubr.f32.gmra.mrb[0].mxu0 %v85
    %v188 = vpop.f32.mrb[0].mxu0
    %v189 = vadd.f32 0.0, %v188
    %v190 = vpop.f32.mrb[0].mxu0
    %191 = vdwg.mxu0
    %v192 = vadd.f32 %v154, %v159
    %v193 = vadd.f32 %v192, %v164
    %v194 = vadd.f32 %v193, %v169
    %v195 = vadd.f32 %v194, %v174
    %v196 = vadd.f32 %v195, %v179
    %v197 = vadd.f32 %v196, %v184
    %v198 = vadd.f32 %v197, %v189
    %v199 = vrot.slane %v198, 4
    %v200 = vadd.f32 %v198, %v199
    %v201 = vrot.slane %v200, 2
    %v202 = vadd.f32 %v200, %v201
    %v203 = vrot.slane %v202, 1
    %v204 = vadd.f32 %v202, %v203
    %v205 = vmul.f32 %v154, %v154
    %v206 = vmul.f32 %v159, %v159
    %v207 = vmul.f32 %v164, %v164
    %v208 = vmul.f32 %v169, %v169
    %v209 = vmul.f32 %v174, %v174
    %v210 = vmul.f32 %v179, %v179
    %v211 = vmul.f32 %v184, %v184
    %v212 = vmul.f32 %v189, %v189
    %v213 = vadd.f32 %v205, %v206
    %v214 = vadd.f32 %v213, %v207
    %v215 = vadd.f32 %v214, %v208
    %v216 = vadd.f32 %v215, %v209
    %v217 = vadd.f32 %v216, %v210
    %v218 = vadd.f32 %v217, %v211
    %v219 = vadd.f32 %v218, %v212
    %v220 = vrot.slane %v219, 4
    %v221 = vadd.f32 %v219, %v220
    %v222 = vrot.slane %v221, 2
    %v223 = vadd.f32 %v221, %v222
    %v224 = vrot.slane %v223, 1
    %v225 = vadd.f32 %v223, %v224
    %v226 = vmul.f32 %v204, 0.015625
    %v227 = vmul.f32 %v225, 0.015625
    %v228 = vmul.f32 %v226, %v226
    %v229 = vsub.f32 %v227, %v228
    %v230 = vmax.f32 %v229, 0.0
    %v231 = vadd.f32 %v230, 1e-05
    %v232 = vrsqrt.pop %v231
    %v233 = vmul.f32 %v57, %v232
    %v234 = vmul.f32 %v226, %v233
    %v236 = vrot.slane %v234, 7
    %v238 = vsub.f32 %v57, %v236
    %v239 = vlaneseq
    %v240 = vshrl.u32 %v239, 7
    %v241 = vsub.s32 0, %v240
    %v242 = vrot.slane %v233, %v241
    %v243 = vmul.f32 %v154, %v242
    %v244 = vmul.f32 %v159, %v242
    %v245 = vmul.f32 %v164, %v242
    %v246 = vmul.f32 %v169, %v242
    %v247 = vmul.f32 %v174, %v242
    %v248 = vmul.f32 %v179, %v242
    %v249 = vmul.f32 %v184, %v242
    %v250 = vmul.f32 %v189, %v242
    %v251 = vlaneseq
    %v252 = vshrl.u32 %v251, 7
    %v253 = vsub.s32 1, %v252
    %v254 = vrot.slane %v238, %v253
    %v255 = vadd.f32 %v243, %v254
    %v256 = vadd.f32 %v244, %v254
    %v257 = vadd.f32 %v245, %v254
    %v258 = vadd.f32 %v246, %v254
    %v259 = vadd.f32 %v247, %v254
    %v260 = vadd.f32 %v248, %v254
    %v261 = vadd.f32 %v249, %v254
    %v262 = vadd.f32 %v250, %v254
    %v263 = vmax.f32 %v255, 0.0
    %v264 = vmax.f32 %v256, 0.0
    %v265 = vmax.f32 %v257, 0.0
    %v266 = vmax.f32 %v258, 0.0
    %v267 = vmax.f32 %v259, 0.0
    %v268 = vmax.f32 %v260, 0.0
    %v269 = vmax.f32 %v261, 0.0
    %v270 = vmax.f32 %v262, 0.0
    %v271 = vld [vmem:[#allocation2] sm:$0xff]
    %v272 = vld [vmem:[#allocation2 + $0x8] sm:$0xff]
    %v273 = vld [vmem:[#allocation2 + $0x10] sm:$0xff]
    %v274 = vld [vmem:[#allocation2 + $0x18] sm:$0xff]
    %v275 = vld [vmem:[#allocation2 + $0x20] sm:$0xff]
    %v276 = vld [vmem:[#allocation2 + $0x28] sm:$0xff]
    %v277 = vld [vmem:[#allocation2 + $0x30] sm:$0xff]
    %v278 = vld [vmem:[#allocation2 + $0x38] sm:$0xff]
    %v279 = vld [vmem:[#allocation2 + $0x40] sm:$0xff]
    %v280 = vld [vmem:[#allocation2 + $0x48] sm:$0xff]
    %v281 = vld [vmem:[#allocation2 + $0x50] sm:$0xff]
    %v282 = vld [vmem:[#allocation2 + $0x58] sm:$0xff]
    %v283 = vld [vmem:[#allocation2 + $0x60] sm:$0xff]
    %v284 = vld [vmem:[#allocation2 + $0x68] sm:$0xff]
    %v285 = vld [vmem:[#allocation2 + $0x70] sm:$0xff]
    %v286 = vld [vmem:[#allocation2 + $0x78] sm:$0xff]
    %287 = vmatprep.subr.mxu0 0.0
    %288 = vmatpush1.msra.mxu0 %v271
    %289 = vmatprep.subr.mxu0 0.0
    %290 = vmatpush1.msra.mxu0 %v272
    %291 = vmatprep.subr.mxu0 0.0
    %292 = vmatpush1.msra.mxu0 %v273
    %293 = vmatprep.subr.mxu0 0.0
    %294 = vmatpush1.msra.mxu0 %v274
    %295 = vmatprep.subr.mxu0 0.0
    %296 = vmatpush1.msra.mxu0 %v275
    %297 = vmatprep.subr.mxu0 0.0
    %298 = vmatpush1.msra.mxu0 %v276
    %299 = vmatprep.subr.mxu0 0.0
    %300 = vmatpush1.msra.mxu0 %v277
    %301 = vmatprep.subr.mxu0 0.0
    %302 = vmatpush1.msra.mxu0 %v278
    %303 = vmatprep.subr.mxu0 0.0
    %304 = vmatpush1.msra.mxu0 %v279
    %305 = vmatprep.subr.mxu0 0.0
    %306 = vmatpush1.msra.mxu0 %v280
    %307 = vmatprep.subr.mxu0 0.0
    %308 = vmatpush1.msra.mxu0 %v281
    %309 = vmatprep.subr.mxu0 0.0
    %310 = vmatpush1.msra.mxu0 %v282
    %311 = vmatprep.subr.mxu0 0.0
    %312 = vmatpush1.msra.mxu0 %v283
    %313 = vmatprep.subr.mxu0 0.0
    %314 = vmatpush1.msra.mxu0 %v284
    %315 = vmatprep.subr.mxu0 0.0
    %316 = vmatpush1.msra.mxu0 %v285
    %317 = vmatprep.subr.mxu0 0.0
    %318 = vmatpush1.msra.mxu0 %v286
    %319 = vmatprep.subr.mxu0 0.0
    %320 = vmatpush1.msra.mxu0 0.0
    %321 = vmatprep.subr.mxu0 0.0
    %322 = vmatpush1.msra.mxu0 0.0
    %323 = vmatprep.subr.mxu0 0.0
    %324 = vmatpush1.msra.mxu0 0.0
    %325 = vmatprep.subr.mxu0 0.0
    %326 = vmatpush1.msra.mxu0 0.0
    %327 = vmatprep.subr.mxu0 0.0
    %328 = vmatpush1.msra.mxu0 0.0
    %329 = vmatprep.subr.mxu0 0.0
    %330 = vmatpush1.msra.mxu0 0.0
    %331 = vmatprep.subr.mxu0 0.0
    %332 = vmatpush1.msra.mxu0 0.0
    %333 = vmatprep.subr.mxu0 0.0
    %334 = vmatpush1.msra.mxu0 0.0
    %335 = vmatprep.subr.mxu0 0.0
    %336 = vmatpush1.msra.mxu0 0.0
    %337 = vmatprep.subr.mxu0 0.0
    %338 = vmatpush1.msra.mxu0 0.0
    %339 = vmatprep.subr.mxu0 0.0
    %340 = vmatpush1.msra.mxu0 0.0
    %341 = vmatprep.subr.mxu0 0.0
    %342 = vmatpush1.msra.mxu0 0.0
    %343 = vmatprep.subr.mxu0 0.0
    %344 = vmatpush1.msra.mxu0 0.0
    %345 = vmatprep.subr.mxu0 0.0
    %346 = vmatpush1.msra.mxu0 0.0
    %347 = vmatprep.subr.mxu0 0.0
    %348 = vmatpush1.msra.mxu0 0.0
    %349 = vmatprep.subr.mxu0 0.0
    %350 = vmatpush1.msra.mxu0 0.0
    %351 = vmatprep.mubr.f32.mxu0 0.0
    %352 = vmatmul.mubr.f32.gmra.mrb[0].mxu0 %v263
    %v353 = vpop.f32.mrb[0].mxu0
    %v354 = vadd.f32 0.0, %v353
    %v355 = vpop.f32.mrb[0].mxu0
    %356 = vmatprep.mubr.f32.mxu0 0.0
    %357 = vmatmul.mubr.f32.gmra.mrb[0].mxu0 %v264
    %v358 = vpop.f32.mrb[0].mxu0
    %v359 = vadd.f32 0.0, %v358
    %v360 = vpop.f32.mrb[0].mxu0
    %361 = vmatprep.mubr.f32.mxu0 0.0
    %362 = vmatmul.mubr.f32.gmra.mrb[0].mxu0 %v265
    %v363 = vpop.f32.mrb[0].mxu0
    %v364 = vadd.f32 0.0, %v363
    %v365 = vpop.f32.mrb[0].mxu0
    %366 = vmatprep.mubr.f32.mxu0 0.0
    %367 = vmatmul.mubr.f32.gmra.mrb[0].mxu0 %v266
    %v368 = vpop.f32.mrb[0].mxu0
    %v369 = vadd.f32 0.0, %v368
    %v370 = vpop.f32.mrb[0].mxu0
    %371 = vmatprep.mubr.f32.mxu0 0.0
    %372 = vmatmul.mubr.f32.gmra.mrb[0].mxu0 %v267
    %v373 = vpop.f32.mrb[0].mxu0
    %v374 = vadd.f32 0.0, %v373
    %v375 = vpop.f32.mrb[0].mxu0
    %376 = vmatprep.mubr.f32.mxu0 0.0
    %377 = vmatmul.mubr.f32.gmra.mrb[0].mxu0 %v268
    %v378 = vpop.f32.mrb[0].mxu0
    %v379 = vadd.f32 0.0, %v378
    %v380 = vpop.f32.mrb[0].mxu0
    %381 = vmatprep.mubr.f32.mxu0 0.0
    %382 = vmatmul.mubr.f32.gmra.mrb[0].mxu0 %v269
    %v383 = vpop.f32.mrb[0].mxu0
    %v384 = vadd.f32 0.0, %v383
    %v385 = vpop.f32.mrb[0].mxu0
    %386 = vmatprep.mubr.f32.mxu0 0.0
    %387 = vmatmul.mubr.f32.gmra.mrb[0].mxu0 %v270
    %v388 = vpop.f32.mrb[0].mxu0
    %v389 = vadd.f32 0.0, %v388
    %v390 = vpop.f32.mrb[0].mxu0
    %391 = vdwg.mxu0
    %v392 = vadd.f32 %v354, %v359
    %v393 = vadd.f32 %v392, %v364
    %v394 = vadd.f32 %v393, %v369
    %v395 = vadd.f32 %v394, %v374
    %v396 = vadd.f32 %v395, %v379
    %v397 = vadd.f32 %v396, %v384
    %v398 = vadd.f32 %v397, %v389
    %v399 = vrot.slane %v398, 4
    %v400 = vadd.f32 %v398, %v399
    %v401 = vrot.slane %v400, 2
    %v402 = vadd.f32 %v400, %v401
    %v403 = vrot.slane %v402, 1
    %v404 = vadd.f32 %v402, %v403
    %v405 = vmul.f32 %v354, %v354
    %v406 = vmul.f32 %v359, %v359
    %v407 = vmul.f32 %v364, %v364
    %v408 = vmul.f32 %v369, %v369
    %v409 = vmul.f32 %v374, %v374
    %v410 = vmul.f32 %v379, %v379
    %v411 = vmul.f32 %v384, %v384
    %v412 = vmul.f32 %v389, %v389
    %v413 = vadd.f32 %v405, %v406
    %v414 = vadd.f32 %v413, %v407
    %v415 = vadd.f32 %v414, %v408
    %v416 = vadd.f32 %v415, %v409
    %v417 = vadd.f32 %v416, %v410
    %v418 = vadd.f32 %v417, %v411
    %v419 = vadd.f32 %v418, %v412
    %v420 = vrot.slane %v419, 4
    %v421 = vadd.f32 %v419, %v420
    %v422 = vrot.slane %v421, 2
    %v423 = vadd.f32 %v421, %v422
    %v424 = vrot.slane %v423, 1
    %v425 = vadd.f32 %v423, %v424
    %v426 = vmul.f32 %v404, 0.015625
    %v427 = vmul.f32 %v425, 0.015625
    %v428 = vmul.f32 %v426, %v426
    %v429 = vsub.f32 %v427, %v428
    %v430 = vmax.f32 %v429, 0.0
    %v431 = vadd.f32 %v430, 1e-05
    %v432 = vrsqrt.pop %v431
    %v433 = vmul.f32 %v57, %v432
    %v434 = vmul.f32 %v426, %v433
    %v436 = vrot.slane %v434, 7
    %v438 = vsub.f32 %v57, %v436
    %v439 = vlaneseq
    %v440 = vshrl.u32 %v439, 7
    %v441 = vsub.s32 2, %v440
    %v442 = vrot.slane %v433, %v441
    %v443 = vmul.f32 %v354, %v442
    %v444 = vmul.f32 %v359, %v442
    %v445 = vmul.f32 %v364, %v442
    %v446 = vmul.f32 %v369, %v442
    %v447 = vmul.f32 %v374, %v442
    %v448 = vmul.f32 %v379, %v442
    %v449 = vmul.f32 %v384, %v442
    %v450 = vmul.f32 %v389, %v442
    %v451 = vlaneseq
    %v452 = vshrl.u32 %v451, 7
    %v453 = vsub.s32 3, %v452
    %v454 = vrot.slane %v438, %v453
    %v455 = vadd.f32 %v443, %v454
    %v456 = vadd.f32 %v444, %v454
    %v457 = vadd.f32 %v445, %v454
    %v458 = vadd.f32 %v446, %v454
    %v459 = vadd.f32 %v447, %v454
    %v460 = vadd.f32 %v448, %v454
    %v461 = vadd.f32 %v449, %v454
    %v462 = vadd.f32 %v450, %v454
    %v463 = vmax.f32 %v455, 0.0
    %v464 = vmax.f32 %v456, 0.0
    %v465 = vmax.f32 %v457, 0.0
    %v466 = vmax.f32 %v458, 0.0
    %v467 = vmax.f32 %v459, 0.0
    %v468 = vmax.f32 %v460, 0.0
    %v469 = vmax.f32 %v461, 0.0
    %v470 = vmax.f32 %v462, 0.0
    %v471 = vld [vmem:[#allocation5] sm:$0xff]
    %v472 = vld [vmem:[#allocation5 + $0x8] sm:$0xff]
    %v473 = vld [vmem:[#allocation5 + $0x10] sm:$0xff]
    %v474 = vld [vmem:[#allocation5 + $0x18] sm:$0xff]
    %v475 = vld [vmem:[#allocation5 + $0x20] sm:$0xff]
    %v476 = vld [vmem:[#allocation5 + $0x28] sm:$0xff]
    %v477 = vld [vmem:[#allocation5 + $0x30] sm:$0xff]
    %v478 = vld [vmem:[#allocation5 + $0x38] sm:$0xff]
    %v479 = vld [vmem:[#allocation5 + $0x40] sm:$0xff]
    %v480 = vld [vmem:[#allocation5 + $0x48] sm:$0xff]
    %v481 = vld [vmem:[#allocation5 + $0x50] sm:$0xff]
    %v482 = vld [vmem:[#allocation5 + $0x58] sm:$0xff]
    %v483 = vld [vmem:[#allocation5 + $0x60] sm:$0xff]
    %v484 = vld [vmem:[#allocation5 + $0x68] sm:$0xff]
    %v485 = vld [vmem:[#allocation5 + $0x70] sm:$0xff]
    %v486 = vld [vmem:[#allocation5 + $0x78] sm:$0xff]
    %v487 = vlaneseq
    %v488 = vshrl.u32 %v487, 7
    %v489 = vsub.s32 4, %v488
    %v490 = vrot.slane %v57, %v489
    %491 = vmatprep.subr.mxu0 0.0
    %492 = vmatpush1.msra.mxu0 %v471
    %493 = vmatprep.subr.mxu0 0.0
    %494 = vmatpush1.msra.mxu0 %v472
    %495 = vmatprep.subr.mxu0 0.0
    %496 = vmatpush1.msra.mxu0 %v473
    %497 = vmatprep.subr.mxu0 0.0
    %498 = vmatpush1.msra.mxu0 %v474
    %499 = vmatprep.subr.mxu0 0.0
    %500 = vmatpush1.msra.mxu0 %v475
    %501 = vmatprep.subr.mxu0 0.0
    %502 = vmatpush1.msra.mxu0 %v476
    %503 = vmatprep.subr.mxu0 0.0
    %504 = vmatpush1.msra.mxu0 %v477
    %505 = vmatprep.subr.mxu0 0.0
    %506 = vmatpush1.msra.mxu0 %v478
    %507 = vmatprep.subr.mxu0 0.0
    %508 = vmatpush1.msra.mxu0 %v479
    %509 = vmatprep.subr.mxu0 0.0
    %510 = vmatpush1.msra.mxu0 %v480
    %511 = vmatprep.subr.mxu0 0.0
    %512 = vmatpush1.msra.mxu0 %v481
    %513 = vmatprep.subr.mxu0 0.0
    %514 = vmatpush1.msra.mxu0 %v482
    %515 = vmatprep.subr.mxu0 0.0
    %516 = vmatpush1.msra.mxu0 %v483
    %517 = vmatprep.subr.mxu0 0.0
    %518 = vmatpush1.msra.mxu0 %v484
    %519 = vmatprep.subr.mxu0 0.0
    %520 = vmatpush1.msra.mxu0 %v485
    %521 = vmatprep.subr.mxu0 0.0
    %522 = vmatpush1.msra.mxu0 %v486
    %523 = vmatprep.subr.mxu0 0.0
    %524 = vmatpush1.msra.mxu0 0.0
    %525 = vmatprep.subr.mxu0 0.0
    %526 = vmatpush1.msra.mxu0 0.0
    %527 = vmatprep.subr.mxu0 0.0
    %528 = vmatpush1.msra.mxu0 0.0
    %529 = vmatprep.subr.mxu0 0.0
    %530 = vmatpush1.msra.mxu0 0.0
    %531 = vmatprep.subr.mxu0 0.0
    %532 = vmatpush1.msra.mxu0 0.0
    %533 = vmatprep.subr.mxu0 0.0
    %534 = vmatpush1.msra.mxu0 0.0
    %535 = vmatprep.subr.mxu0 0.0
    %536 = vmatpush1.msra.mxu0 0.0
    %537 = vmatprep.subr.mxu0 0.0
    %538 = vmatpush1.msra.mxu0 0.0
    %539 = vmatprep.subr.mxu0 0.0
    %540 = vmatpush1.msra.mxu0 0.0
    %541 = vmatprep.subr.mxu0 0.0
    %542 = vmatpush1.msra.mxu0 0.0
    %543 = vmatprep.subr.mxu0 0.0
    %544 = vmatpush1.msra.mxu0 0.0
    %545 = vmatprep.subr.mxu0 0.0
    %546 = vmatpush1.msra.mxu0 0.0
    %547 = vmatprep.subr.mxu0 0.0
    %548 = vmatpush1.msra.mxu0 0.0
    %549 = vmatprep.subr.mxu0 0.0
    %550 = vmatpush1.msra.mxu0 0.0
    %551 = vmatprep.subr.mxu0 0.0
    %552 = vmatpush1.msra.mxu0 0.0
    %553 = vmatprep.subr.mxu0 0.0
    %554 = vmatpush1.msra.mxu0 0.0
    %555 = vmatprep.mubr.f32.mxu0 0.0
    %556 = vmatmul.mubr.f32.gmra.mrb[0].mxu0 %v463
    %v557 = vpop.f32.mrb[0].mxu0
    %v558 = vadd.f32 %v490, %v557
    %v559 = vpop.f32.mrb[0].mxu0
    %560 = vmatprep.mubr.f32.mxu0 0.0
    %561 = vmatmul.mubr.f32.gmra.mrb[0].mxu0 %v464
    %v562 = vpop.f32.mrb[0].mxu0
    %v563 = vadd.f32 %v490, %v562
    %v564 = vpop.f32.mrb[0].mxu0
    %565 = vmatprep.mubr.f32.mxu0 0.0
    %566 = vmatmul.mubr.f32.gmra.mrb[0].mxu0 %v465
    %v567 = vpop.f32.mrb[0].mxu0
    %v568 = vadd.f32 %v490, %v567
    %v569 = vpop.f32.mrb[0].mxu0
    %570 = vmatprep.mubr.f32.mxu0 0.0
    %571 = vmatmul.mubr.f32.gmra.mrb[0].mxu0 %v466
    %v572 = vpop.f32.mrb[0].mxu0
    %v573 = vadd.f32 %v490, %v572
    %v574 = vpop.f32.mrb[0].mxu0
    %575 = vmatprep.mubr.f32.mxu0 0.0
    %576 = vmatmul.mubr.f32.gmra.mrb[0].mxu0 %v467
    %v577 = vpop.f32.mrb[0].mxu0
    %v578 = vadd.f32 %v490, %v577
    %v579 = vpop.f32.mrb[0].mxu0
    %580 = vmatprep.mubr.f32.mxu0 0.0
    %581 = vmatmul.mubr.f32.gmra.mrb[0].mxu0 %v468
    %v582 = vpop.f32.mrb[0].mxu0
    %v583 = vadd.f32 %v490, %v582
    %v584 = vpop.f32.mrb[0].mxu0
    %585 = vmatprep.mubr.f32.mxu0 0.0
    %586 = vmatmul.mubr.f32.gmra.mrb[0].mxu0 %v469
    %v587 = vpop.f32.mrb[0].mxu0
    %v588 = vadd.f32 %v490, %v587
    %v589 = vpop.f32.mrb[0].mxu0
    %590 = vmatprep.mubr.f32.mxu0 0.0
    %591 = vmatmul.mubr.f32.gmra.mrb[0].mxu0 %v470
    %v592 = vpop.f32.mrb[0].mxu0
    %v593 = vadd.f32 %v490, %v592
    %v594 = vpop.f32.mrb[0].mxu0
    %595 = vdwg.mxu0
    %596 = vst [vmem:[#allocation7] sm:$0xff] %v558
    %597 = vst [vmem:[#allocation7 + $0x8] sm:$0xff] %v563
    %598 = vst [vmem:[#allocation7 + $0x10] sm:$0xff] %v568
    %599 = vst [vmem:[#allocation7 + $0x18] sm:$0xff] %v573
    %600 = vst [vmem:[#allocation7 + $0x20] sm:$0xff] %v578
    %601 = vst [vmem:[#allocation7 + $0x28] sm:$0xff] %v583
    %602 = vst [vmem:[#allocation7 + $0x30] sm:$0xff] %v588
    %603 = vst [vmem:[#allocation7 + $0x38] sm:$0xff] %v593
    // Predicated region
    $region30: #{tpu_custom_call.1} parent=1 // pred_check
      _
    $region31: #{tpu_custom_call.1} parent=1 // pred_check_branch
      %605 = sbr.rel (0) target = $region33
    $region32: #{tpu_custom_call.1} parent=1 // pred_region
      %s607 = ssub.s32 1024, 1024
      %608 = vsyncadd [#allocation4], %s607
      %s609 = sshll.u32 [#allocation7], 4
      %s610 = int_to_ptr.vmem [resolvable:$true] %s609
      %615 = dma.vmem_to_hbm [thread:$0]  %s610, 1024, %s5, [#allocation4], 128, 128, 8
    $region33: #{tpu_custom_call.1} parent=1 // pred_fallthru
      _
    // Predicated region
    $region34: #{tpu_custom_call.1} parent=1 // pred_check
      _
    $region35: #{tpu_custom_call.1} parent=1 // pred_check_branch
      %617 = sbr.rel (0) target = $region37
    $region36: #{tpu_custom_call.1} parent=1 // pred_region
      %618 = dma.done [#allocation4], 1024
    $region37: #{tpu_custom_call.1} parent=1 // pred_fallthru
      _
    %619 = vsyncpa [#allocation3], 1
    %620 = vsyncpa [#allocation6], 1
    %621 = vsyncpa [#allocation4], 1

</llo_original>
